<compile_context>
chip_gen: v5e
topology: v5e:2x2
jax: 0.10.0
libtpu: 0.0.40
codegen_flags: <defaults>
</compile_context>

<pallas_src>
import jax
import jax.numpy as jnp
from jax import lax
from jax.experimental import pallas as pl
from jax.experimental.pallas import tpu as pltpu

_LANE = 128
_SUBLANE = 8
_NEG = -1e30  # padded-class logit value (finite; avoids inf arithmetic)


def _round_up(x, m):
    return ((x + m - 1) // m) * m


def mlc_kernel(x_ref, w_ref, b_ref, tags_ref, idx_ref):
    # x_ref: (TB, F) f32, w_ref: (F, Cp) bf16 (pre-transposed), b_ref: (1, Cp) f32
    x = x_ref[...].astype(jnp.bfloat16)
    logits = jnp.dot(x, w_ref[...], preferred_element_type=jnp.float32) + b_ref[...]

    # Row max (shared by the argmax and the stable softmax).
    m = jnp.max(logits, axis=-1, keepdims=True)

    # top-1 index per row from the logits (softmax is monotonic); first index wins on ties,
    # matching torch.topk.  Padded classes sit at -1e30 and can never win.
    cp = logits.shape[-1]
    ids = lax.broadcasted_iota(jnp.int32, logits.shape, 1)
    idx = jnp.min(jnp.where(logits >= m, ids, jnp.int32(cp)), axis=-1, keepdims=True)
    idx_ref[...] = idx.astype(jnp.int32)

    # Numerically stable softmax over the (padded) class dim; padded columns contribute
    # exp(-1e30 - m) == 0 to the sum.
    e = jnp.exp(logits - m)
    s = jnp.sum(e, axis=-1, keepdims=True)
    tags_ref[...] = (e * pl.reciprocal(s, approx=True)).astype(tags_ref.dtype)


def mlc_forward(avg_features, clf_w, clf_b, embed_w, k=1):
    """avg_features: (B, F); clf_w: (C, F); clf_b: (C,); embed_w: (C, D)."""
    B, F = avg_features.shape
    C = clf_w.shape[0]
    # TODO(synk): for k > 1 run lax.top_k on the returned tags (kernel emits top-1 only).
    assert k == 1, "kernel computes top-1; for k>1 use lax.top_k on tags"

    Cp = _round_up(C, _LANE)
    if B <= _LANE:
        Bp = _round_up(B, _SUBLANE)
        TB = Bp
    else:
        Bp = _round_up(B, _LANE)
        TB = _LANE

    # Batch-pad x with zeros (padded rows are sliced off afterwards).
    x = jnp.zeros((Bp, F), jnp.float32).at[:B].set(avg_features.astype(jnp.float32))
    # Pre-transposed bf16 weight, zero-padded extra classes.
    w_t = jnp.zeros((F, Cp), jnp.bfloat16).at[:, :C].set(clf_w.T.astype(jnp.bfloat16))
    # Bias: real classes get the bias, padded classes a large negative -> zero softmax mass.
    b = jnp.full((1, Cp), _NEG, jnp.float32).at[0, :C].set(clf_b.astype(jnp.float32))

    tags_p, idx_p = pl.pallas_call(
        mlc_kernel,
        out_shape=(
            jax.ShapeDtypeStruct((Bp, Cp), jnp.float32),
            jax.ShapeDtypeStruct((Bp, 1), jnp.int32),
        ),
        grid=(Bp // TB,),
        in_specs=[
            pl.BlockSpec((TB, F), lambda i: (i, 0)),
            pl.BlockSpec((F, Cp), lambda i: (0, 0)),   # weight resident across batch tiles
            pl.BlockSpec((1, Cp), lambda i: (0, 0)),
        ],
        out_specs=(
            pl.BlockSpec((TB, Cp), lambda i: (i, 0)),
            pl.BlockSpec((TB, 1), lambda i: (i, 0)),
        ),
        compiler_params=pltpu.CompilerParams(
            dimension_semantics=("parallel",),
        ),
    )(x, w_t, b)

    tags = tags_p[:B, :C]
    top_idx = idx_p[:B]                                   # (B, k) with k == 1
    # Embedding lookup (glue): (B, k) indices -> (B, k, D)
    semantic_features = jnp.take(embed_w, top_idx, axis=0)
    return tags, semantic_features


if __name__ == "__main__":
    # Small shapes consistent with the module's forward:
    B = 2      # batch
    F = 32     # fc_in_features
    C = 11     # classes
    D = 16     # sementic_features_dim
    k = 1

    key = jax.random.PRNGKey(0)
    kx, kw, ke = jax.random.split(key, 3)

    avg_features = jax.random.normal(kx, (B, F), dtype=jnp.float32)
    # __init_weight: classifier.weight ~ U(-0.1, 0.1), bias = 0
    clf_w = jax.random.uniform(kw, (C, F), dtype=jnp.float32, minval=-0.1, maxval=0.1)
    clf_b = jnp.zeros((C,), dtype=jnp.float32)
    # nn.Embedding default init: N(0, 1)
    embed_w = jax.random.normal(ke, (C, D), dtype=jnp.float32)

    tags, semantic_features = mlc_forward(avg_features, clf_w, clf_b, embed_w, k=k)
    jax.block_until_ready((tags, semantic_features))

    # Reference that mirrors the kernel's precision (bf16 matmul, f32 accumulate/softmax).
    ref_logits = jnp.dot(
        avg_features.astype(jnp.bfloat16),
        clf_w.T.astype(jnp.bfloat16),
        preferred_element_type=jnp.float32,
    ) + clf_b
    ref_tags = jax.nn.softmax(ref_logits, axis=1)
    ref_idx = lax.top_k(ref_logits, k)[1]
    ref_sem = jnp.take(embed_w, ref_idx, axis=0)

    # Full-f32 PyTorch-equivalent reference (loose check only; bf16 MXU inputs).
    ref_tags_f32 = jax.nn.softmax(avg_features @ clf_w.T + clf_b, axis=1)

    assert tags.shape == (B, C)
    assert semantic_features.shape == (B, k, D)
    assert jnp.allclose(tags, ref_tags, atol=2e-3), "tags mismatch vs bf16 reference"
    assert jnp.allclose(tags, ref_tags_f32, atol=2e-2), "tags drifted from f32 reference"
    assert jnp.allclose(semantic_features, ref_sem), "semantic_features mismatch"
    assert jnp.all(jnp.abs(jnp.sum(tags, axis=1) - 1.0) < 2e-3), "softmax rows not normalized"

    print("KERNEL_OK")
</pallas_src>

<mosaic_0001>
module attributes {stable_mosaic.version = 11 : i64} {
  func.func @mlc_kernel(%arg0: i32, %arg1: memref<8x32xf32, #tpu.memory_space<vmem>>, %arg2: memref<32x128xbf16, #tpu.memory_space<vmem>>, %arg3: memref<1x128xf32, #tpu.memory_space<vmem>>, %arg4: memref<8x128xf32, #tpu.memory_space<vmem>>, %arg5: memref<8x1xi32, #tpu.memory_space<vmem>>) attributes {dimension_semantics = [#tpu.dimension_semantics<parallel>], iteration_bounds = array<i64: 1>, scalar_prefetch = 0 : i64, scratch_operands = 0 : i64, tpu.core_type = #tpu.core_type<tc>, window_params = [{transform_indices = @transform_0, window_bounds = array<i64: 8, 32>}, {pipeline_mode = #tpu.pipeline_mode<synchronous>, transform_indices = @transform_1, window_bounds = array<i64: 32, 128>}, {pipeline_mode = #tpu.pipeline_mode<synchronous>, transform_indices = @transform_2, window_bounds = array<i64: 1, 128>}, {transform_indices = @transform_3, window_bounds = array<i64: 8, 128>}, {transform_indices = @transform_4, window_bounds = array<i64: 8, 1>}]} {
    %c0 = arith.constant 0 : index
    %c0_0 = arith.constant 0 : index
    %0 = vector.load %arg1[%c0, %c0_0] : memref<8x32xf32, #tpu.memory_space<vmem>>, vector<8x32xf32>
    %1 = arith.truncf %0 : vector<8x32xf32> to vector<8x32xbf16>
    %c0_1 = arith.constant 0 : index
    %c0_2 = arith.constant 0 : index
    %2 = vector.load %arg2[%c0_1, %c0_2] : memref<32x128xbf16, #tpu.memory_space<vmem>>, vector<32x128xbf16>
    %cst = arith.constant dense<0.000000e+00> : vector<8x128xf32>
    %3 = tpu.matmul %1, %2, %cst {dimension_numbers = #tpu.dot_dimension_numbers<[1], [0], [0], [1], [0, 0, 1, 1], [], []>} : vector<8x32xbf16>, vector<32x128xbf16>, vector<8x128xf32> -> vector<8x128xf32>
    %c0_3 = arith.constant 0 : index
    %c0_4 = arith.constant 0 : index
    %4 = vector.load %arg3[%c0_3, %c0_4] : memref<1x128xf32, #tpu.memory_space<vmem>>, vector<1x128xf32>
    %5 = vector.broadcast %4 : vector<1x128xf32> to vector<8x128xf32>
    %6 = arith.addf %3, %5 : vector<8x128xf32>
    %cst_5 = arith.constant dense<0xFF800000> : vector<8xf32>
    %7 = vector.multi_reduction <maximumf>, %6, %cst_5 [1] : vector<8x128xf32> to vector<8xf32>
    %8 = vector.shape_cast %7 : vector<8xf32> to vector<8x1xf32>
    %9 = tpu.iota {dimensions = array<i32: 1>} : vector<8x128xi32>
    %10 = vector.broadcast %8 : vector<8x1xf32> to vector<8x128xf32>
    %11 = arith.cmpf oge, %6, %10 : vector<8x128xf32>
    %c128_i32 = arith.constant 128 : i32
    %12 = vector.broadcast %c128_i32 : i32 to vector<8x128xi32>
    %13 = arith.select %11, %9, %12 : vector<8x128xi1>, vector<8x128xi32>
    %cst_6 = arith.constant dense<2147483647> : vector<8xi32>
    %14 = vector.multi_reduction <minsi>, %13, %cst_6 [1] : vector<8x128xi32> to vector<8xi32>
    %15 = vector.shape_cast %14 : vector<8xi32> to vector<8x1xi32>
    %c0_7 = arith.constant 0 : index
    %c0_8 = arith.constant 0 : index
    %16 = vector.load %arg5[%c0_7, %c0_8] : memref<8x1xi32, #tpu.memory_space<vmem>>, vector<8x1xi32>
    tpu.vector_store %arg5[%c0_7, %c0_8], %15 {strides = array<i32>} : memref<8x1xi32, #tpu.memory_space<vmem>>, vector<8x1xi32>,
    %17 = vector.broadcast %8 : vector<8x1xf32> to vector<8x128xf32>
    %18 = arith.subf %6, %17 : vector<8x128xf32>
    %19 = math.exp %18 : vector<8x128xf32>
    %cst_9 = arith.constant dense<0.000000e+00> : vector<8xf32>
    %20 = vector.multi_reduction <add>, %19, %cst_9 [1] : vector<8x128xf32> to vector<8xf32>
    %21 = vector.shape_cast %20 : vector<8xf32> to vector<8x1xf32>
    %22 = tpu.reciprocal %21 {approx = true} : vector<8x1xf32> -> vector<8x1xf32>
    %23 = vector.broadcast %22 : vector<8x1xf32> to vector<8x128xf32>
    %24 = arith.mulf %19, %23 : vector<8x128xf32>
    %c0_10 = arith.constant 0 : index
    %c0_11 = arith.constant 0 : index
    %25 = vector.load %arg4[%c0_10, %c0_11] : memref<8x128xf32, #tpu.memory_space<vmem>>, vector<8x128xf32>
    tpu.vector_store %arg4[%c0_10, %c0_11], %24 {strides = array<i32>} : memref<8x128xf32, #tpu.memory_space<vmem>>, vector<8x128xf32>,
    return
  }
  func.func @transform_0(%arg0: i32) -> (i32, i32) {
    %c0_i32 = arith.constant 0 : i32
    %c0_i32_0 = arith.constant 0 : i32
    return %arg0, %c0_i32 : i32, i32
  }
  func.func @transform_1(%arg0: i32) -> (i32, i32) {
    %c0_i32 = arith.constant 0 : i32
    %c0_i32_0 = arith.constant 0 : i32
    %c0_i32_1 = arith.constant 0 : i32
    return %c0_i32, %c0_i32_0 : i32, i32
  }
  func.func @transform_2(%arg0: i32) -> (i32, i32) {
    %c0_i32 = arith.constant 0 : i32
    %c0_i32_0 = arith.constant 0 : i32
    %c0_i32_1 = arith.constant 0 : i32
    return %c0_i32, %c0_i32_0 : i32, i32
  }
  func.func @transform_3(%arg0: i32) -> (i32, i32) {
    %c0_i32 = arith.constant 0 : i32
    %c0_i32_0 = arith.constant 0 : i32
    return %arg0, %c0_i32 : i32, i32
  }
  func.func @transform_4(%arg0: i32) -> (i32, i32) {
    %c0_i32 = arith.constant 0 : i32
    %c0_i32_0 = arith.constant 0 : i32
    return %arg0, %c0_i32 : i32, i32
  }
}

</mosaic_0001>

<llo_original>
// kernel: tpu_custom_call.1
$region0: #{tpu_custom_call.1}
  #allocation0 [shape = 'u32[]', space=smem, size = 0x4, offset = 0x4, fixed_abs, tag = 'smem constant byte address 0x4 - core index']
  #allocation1 [shape = 'u32[72,128]{1,0:T(1,128)}', space=vmem, size = 0x9000, scoped, tag = 'internal scratch']
  %s0 = inlined_call_operand.hbm [shape: f32[8,32], index: 0, kind: input, shape index: {}]
  %s1 = inlined_call_operand.hbm [shape: bf16[32,128], index: 1, kind: input, shape index: {}]
  %s2 = inlined_call_operand.vmem [shape: f32[1,128], index: 2, kind: input, shape index: {}]
  %s3 = inlined_call_operand.hbm [shape: f32[8,128], index: 3, kind: output, shape index: {0}]
  %s4 = inlined_call_operand.vmem [shape: s32[8,1], index: 4, kind: output, shape index: {1}]
  %5 = xla_tuple %s3, %s4
  %s6 = sld [smem:[#allocation0]]
  $region38: #{tpu_custom_call.1} parent=0
    _
  %s8 = ssub.s32 1, %s6
  %s9 = scalar_select 0, %s8, %s6
  $region1: #{tpu_custom_call.1} parent=0
    #allocation2 [shape = 'u8[4096]{0}', space=vmem, size = 0x1000, scoped, tag = 'input window, operand 0, single buffered']
    #allocation3 [shape = 's32[1]{0}', space=sflag, size = 0x4, scoped, tag = 'scoped memory for tpu_custom_call.1']
    #allocation4 [shape = 's32[1]{0}', space=sflag, size = 0x4, scoped, tag = 'scoped memory for tpu_custom_call.1']
    #allocation5 [shape = 'u8[8192]{0}', space=vmem, size = 0x2000, scoped, tag = 'input window, operand 1, single buffered']
    #allocation6 [shape = 's32[1]{0}', space=sflag, size = 0x4, scoped, tag = 'scoped memory for tpu_custom_call.1']
    #allocation7 [shape = 'u8[4096]{0}', space=vmem, size = 0x1000, scoped, tag = 'output window, operand 0, single buffered']
    %10 = vsyncpa [#allocation3], 0
    %11 = vsyncpa [#allocation6], 0
    %12 = vsyncpa [#allocation4], 0
    // Predicated region
    $region2: #{tpu_custom_call.1} parent=1 // pred_check
      _
    $region3: #{tpu_custom_call.1} parent=1 // pred_check_branch
      %14 = sbr.rel (0) target = $region5
    $region4: #{tpu_custom_call.1} parent=1 // pred_region
      %16 = vsyncadd [#allocation3], 0
      %s18 = sshll.u32 %s0, 4
      %s19 = int_to_ptr.hbm [resolvable:$true] %s18
      %s20 = sshll.u32 [#allocation2], 4
      %s21 = int_to_ptr.vmem [resolvable:$true] %s20
      %23 = dma.hbm_to_vmem [thread:$0]  %s19, 128, %s21, [#allocation3]
    $region5: #{tpu_custom_call.1} parent=1 // pred_fallthru
      _
    // Predicated region
    $region6: #{tpu_custom_call.1} parent=1 // pred_check
      _
    $region7: #{tpu_custom_call.1} parent=1 // pred_check_branch
      %25 = sbr.rel (0) target = $region9
    $region8: #{tpu_custom_call.1} parent=1 // pred_region
      %27 = vsyncadd [#allocation6], 0
      %s28 = sshll.u32 %s1, 4
      %s29 = int_to_ptr.hbm [resolvable:$true] %s28
      %s30 = sshll.u32 [#allocation5], 4
      %s31 = int_to_ptr.vmem [resolvable:$true] %s30
      %36 = dma.hbm_to_vmem [thread:$0]  %s29, 256, %s31, [#allocation6], 64, 64, 4
    $region9: #{tpu_custom_call.1} parent=1 // pred_fallthru
      _
    // Predicated region
    $region10: #{tpu_custom_call.1} parent=1 // pred_check
      _
    $region11: #{tpu_custom_call.1} parent=1 // pred_check_branch
      %38 = sbr.rel (0) target = $region13
    $region12: #{tpu_custom_call.1} parent=1 // pred_region
      _
    $region13: #{tpu_custom_call.1} parent=1 // pred_fallthru
      _
    // Predicated region
    $region14: #{tpu_custom_call.1} parent=1 // pred_check
      _
    $region15: #{tpu_custom_call.1} parent=1 // pred_check_branch
      %40 = sbr.rel (0) target = $region17
    $region16: #{tpu_custom_call.1} parent=1 // pred_region
      %42 = dma.done [#allocation3], 128
    $region17: #{tpu_custom_call.1} parent=1 // pred_fallthru
      _
    // Predicated region
    $region18: #{tpu_custom_call.1} parent=1 // pred_check
      _
    $region19: #{tpu_custom_call.1} parent=1 // pred_check_branch
      %44 = sbr.rel (0) target = $region21
    $region20: #{tpu_custom_call.1} parent=1 // pred_region
      %46 = dma.done [#allocation6], 256
    $region21: #{tpu_custom_call.1} parent=1 // pred_fallthru
      _
    %v48 = vld [vmem:[#allocation2] sm:$0xff]
    %v49 = vpack.c.bf16 %v48, %v48
    %v50 = vld [vmem:[#allocation5] sm:$0xf]
    %v51 = vld [vmem:[#allocation5 + $0x4] sm:$0xf]
    %v52 = vld [vmem:[#allocation5 + $0x8] sm:$0xf]
    %v53 = vld [vmem:[#allocation5 + $0xc] sm:$0xf]
    %v54 = vld [vmem:[%s2] sm:$0x1]
    %v56 = vperm.slane %v54, 0
    %v62 = vunpack.c.l.b16 %v50
    %v63 = vunpack.c.l.b16 %v51
    %v64 = vunpack.c.l.b16 %v52
    %v65 = vunpack.c.l.b16 %v53
    %v66 = vpack.c.b16 %v63, %v62
    %v67 = vpack.c.b16 %v65, %v64
    %vm70 = vcmask 261120
    %v72 = vsel %vm70, %v49, 0
    %74 = vmatpush.bf16.msra.mxu0 0
    %75 = vmatpush.bf16.msra.mxu0 0
    %76 = vmatpush.bf16.msra.mxu0 0
    %77 = vmatpush.bf16.msra.mxu0 0
    %78 = vmatpush.bf16.msra.mxu0 0
    %79 = vmatpush.bf16.msra.mxu0 0
    %80 = vmatpush.bf16.msra.mxu0 %v67
    %81 = vmatpush.bf16.msra.mxu0 %v66
    %82 = vmatmul.bf16.gmra.mxu0 %v72
    %v83 = vpop.f32.mrf.mxu0
    %v84 = vadd.f32 %v56, %v83
    %v85 = vpop.f32.mrf.mxu0
    %86 = vdwg.mxu0
    %87 = vmax.xlane.f32.xlu0 %v84
    %v88 = vpop.xlane.xlu0 %87
    %v89 = vlaneseq
    %v90 = vand.u32 %v89, 127
    %vm91 = vcmp.ge.f32.partialorder %v84, %v88
    %v92 = vsel %vm91, %v90, 128
    %v93 = vand.u32 %v92, 65535
    %v94 = vshra.s32 %v92, 16
    %v95 = vcvt.s32.f32 %v93
    %v96 = vcvt.s32.f32 %v94
    %97 = vmin.xlane.f32.xlu0 %v96
    %v98 = vpop.xlane.xlu0 %97
    %vm99 = vcmp.eq.f32.partialorder %v96, %v98
    %v100 = vsel %vm99, %v95, inf
    %101 = vmin.xlane.f32.xlu0 %v100
    %v102 = vpop.xlane.xlu0 %101
    %v103 = vcvt.f32.s32 %v102
    %v104 = vcvt.f32.s32 %v98
    %v105 = vshll.u32 %v104, 16
    %v106 = vadd.s32 %v105, %v103
    %vm107 = vcmask 7168
    %108 = vst.msk [vmem:[%s4] sm:$0xff] %vm107, %v106
    %v109 = vsub.f32 %v84, %v88
    %v110 = vmul.f32 %v109, 1.442695
    %v111 = vpow.pop %v110
    %112 = vadd.xlane.f32.xlu0 %v111
    %v113 = vpop.xlane.xlu0 %112
    %v114 = vrcp.pop %v113
    %v115 = vmul.f32 %v111, %v114
    %116 = vst [vmem:[#allocation7] sm:$0xff] %v115
    // Predicated region
    $region22: #{tpu_custom_call.1} parent=1 // pred_check
      _
    $region23: #{tpu_custom_call.1} parent=1 // pred_check_branch
      %118 = sbr.rel (0) target = $region25
    $region24: #{tpu_custom_call.1} parent=1 // pred_region
      %120 = vsyncadd [#allocation4], 0
      %s122 = sshll.u32 [#allocation7], 4
      %s123 = int_to_ptr.vmem [resolvable:$true] %s122
      %s124 = sshll.u32 %s3, 4
      %s125 = int_to_ptr.hbm [resolvable:$true] %s124
      %127 = dma.vmem_to_hbm [thread:$0]  %s123, 128, %s125, [#allocation4]
    $region25: #{tpu_custom_call.1} parent=1 // pred_fallthru
      _
    // Predicated region
    $region26: #{tpu_custom_call.1} parent=1 // pred_check
      _
    $region27: #{tpu_custom_call.1} parent=1 // pred_check_branch
      %129 = sbr.rel (0) target = $region29
    $region28: #{tpu_custom_call.1} parent=1 // pred_region
      _
    $region29: #{tpu_custom_call.1} parent=1 // pred_fallthru
      _
    // Predicated region
    $region30: #{tpu_custom_call.1} parent=1 // pred_check
      _
    $region31: #{tpu_custom_call.1} parent=1 // pred_check_branch
      %131 = sbr.rel (0) target = $region33
    $region32: #{tpu_custom_call.1} parent=1 // pred_region
      %133 = dma.done [#allocation4], 128
    $region33: #{tpu_custom_call.1} parent=1 // pred_fallthru
      _
    // Predicated region
    $region34: #{tpu_custom_call.1} parent=1 // pred_check
      _
    $region35: #{tpu_custom_call.1} parent=1 // pred_check_branch
      %135 = sbr.rel (0) target = $region37
    $region36: #{tpu_custom_call.1} parent=1 // pred_region
      _
    $region37: #{tpu_custom_call.1} parent=1 // pred_fallthru
      _
    %136 = vsyncpa [#allocation3], 1
    %137 = vsyncpa [#allocation6], 1
    %138 = vsyncpa [#allocation4], 1

</llo_original>
